<compile_context>
chip_gen: v7x
topology: tpu7x:2x2x1
jax: 0.10.0
libtpu: 0.0.40
codegen_flags: <defaults>
</compile_context>

<pallas_src>
import functools

import jax
import jax.numpy as jnp
from jax.experimental import pallas as pl
from jax.experimental.pallas import tpu as pltpu


def _pw_corr_adj_kernel(z_ref, x_ref, w1t_ref, b1_ref, w2t_ref, b2_ref,
                        wadj_ref, badj_ref, o_ref, *, inv_ns):
    z = z_ref[...]                      # (NB, Nk, C)   bf16
    x = x_ref[...]                      # (NB, C, Nsp)  bf16

    # --- pixel-wise correlation: batched (Nk,C)x(C,Nsp) on the MXU, f32 acc ---
    corr = jax.lax.dot_general(
        z, x, (((2,), (1,)), ((0,), (0,))),
        preferred_element_type=jnp.float32)              # (NB, Nk, Nsp) f32

    # --- channel attention (CAModule, reduction=1); tiny, kept in f32 ---
    # Padded search columns are exactly zero, so sum * (1/true_Ns) == mean.
    gap = jnp.sum(corr, axis=-1) * inv_ns                 # (NB, Nk)
    h = jnp.maximum(
        jnp.dot(gap, w1t_ref[...], preferred_element_type=jnp.float32)
        + b1_ref[...], 0.0)                               # (NB, Nk)
    att = jax.nn.sigmoid(
        jnp.dot(h, w2t_ref[...], preferred_element_type=jnp.float32)
        + b2_ref[...])                                    # (NB, Nk)

    # --- fold attention into the 1x1-conv weights (scale (adj,Nk), not (Nk,Nsp)) ---
    w_eff = wadj_ref[...][None, :, :] * att[:, None, :]   # (NB, adj, Nk)

    # --- adj_layer: batched (adj,Nk)x(Nk,Nsp) on the MXU ---
    out = jax.lax.dot_general(
        w_eff, corr, (((2,), (1,)), ((0,), (0,))),
        preferred_element_type=jnp.float32)               # (NB, adj, Nsp)
    o_ref[...] = (out + badj_ref[...]).astype(o_ref.dtype)


def pw_corr_adj(kernel_z, search_x, params):
    """kernel_z: (B, C, Hz, Wz)  search_x: (B, C, Hx, Wx)  (NCHW, like PyTorch).
    Returns dict {'cls': y, 'reg': y} with y: (B, adj_channel, Hx, Wx)."""
    B, C, Hz, Wz = kernel_z.shape
    _, _, Hx, Wx = search_x.shape
    Nk = Hz * Wz
    Ns = Hx * Wx
    adj = params["w_adj"].shape[0]
    assert params["w1"].shape == (Nk, Nk), "num_kernel must equal Hz*Wz"

    # Lane-dense output: pad the search spatial dim up to a multiple of 128.
    Nsp = pl.cdiv(Ns, 128) * 128
    # Batches per grid step: amortize per-step overhead but keep >=2 steps
    # (a "parallel" batch axis) so v7x can use both TensorCores.
    NB = max(1, min(8, B // 2))
    G = pl.cdiv(B, NB)
    B_pad = G * NB

    # Template pre-transposed to (B, Nk, C) once in XLA (no in-kernel .T);
    # matmul operands cast to bf16 (f32 accumulation on the MXU).
    z = kernel_z.reshape(B, C, Nk).transpose(0, 2, 1).astype(jnp.bfloat16)
    x = search_x.reshape(B, C, Ns).astype(jnp.bfloat16)
    if Nsp != Ns:
        x = jnp.pad(x, ((0, 0), (0, 0), (0, Nsp - Ns)))
    if B_pad != B:
        z = jnp.pad(z, ((0, B_pad - B), (0, 0), (0, 0)))
        x = jnp.pad(x, ((0, B_pad - B), (0, 0), (0, 0)))

    # Attention / adj params (attention math stays f32 in-kernel).
    w1t = params["w1"].T.astype(jnp.float32)                      # (Nk, Nk)
    b1 = params["b1"].reshape(1, Nk).astype(jnp.float32)          # (1, Nk)
    w2t = params["w2"].T.astype(jnp.float32)                      # (Nk, Nk)
    b2 = params["b2"].reshape(1, Nk).astype(jnp.float32)          # (1, Nk)
    w_adj = params["w_adj"].astype(jnp.float32)                   # (adj, Nk)
    b_adj = params["b_adj"].reshape(adj, 1).astype(jnp.float32)   # (adj, 1)

    full = lambda a: pl.BlockSpec(a.shape, lambda g: (0,) * a.ndim)

    kernel = functools.partial(_pw_corr_adj_kernel, inv_ns=1.0 / Ns)

    out = pl.pallas_call(
        kernel,
        out_shape=jax.ShapeDtypeStruct((B_pad, adj, Nsp), jnp.float32),
        grid=(G,),
        in_specs=[
            pl.BlockSpec((NB, Nk, C), lambda g: (g, 0, 0)),    # template
            pl.BlockSpec((NB, C, Nsp), lambda g: (g, 0, 0)),   # search (padded)
            full(w1t), full(b1),
            full(w2t), full(b2),
            full(w_adj), full(b_adj),
        ],
        out_specs=pl.BlockSpec((NB, adj, Nsp), lambda g: (g, 0, 0)),
        compiler_params=pltpu.CompilerParams(
            dimension_semantics=("parallel",)),
    )(z, x, w1t, b1, w2t, b2, w_adj, b_adj)

    y = out[:B, :, :Ns].reshape(B, adj, Hx, Wx)
    return {"cls": y, "reg": y}


def init_params(key, num_kernel, adj_channel):
    """Deterministic synthetic parameters matching the PyTorch module shapes:
       CAModule.conv1/conv2: Conv2d(num_kernel, num_kernel, 1)  (reduction=1)
       adj_layer:            Conv2d(num_kernel, adj_channel, 1)"""
    k1, k2, k3, k4, k5, k6 = jax.random.split(key, 6)
    s = 0.1
    return {
        "w1": s * jax.random.normal(k1, (num_kernel, num_kernel), jnp.float32),
        "b1": s * jax.random.normal(k2, (num_kernel,), jnp.float32),
        "w2": s * jax.random.normal(k3, (num_kernel, num_kernel), jnp.float32),
        "b2": s * jax.random.normal(k4, (num_kernel,), jnp.float32),
        "w_adj": s * jax.random.normal(k5, (adj_channel, num_kernel), jnp.float32),
        "b_adj": s * jax.random.normal(k6, (adj_channel,), jnp.float32),
    }


def _reference(kernel_z, search_x, params, matmul_dtype=jnp.float32):
    # Pure-JAX reference of the same math (for sanity checking).
    # matmul_dtype lets us round the correlation operands to bf16 like the
    # kernel does, so the tight check isolates the kernel's correctness.
    B, C, Hz, Wz = kernel_z.shape
    _, _, Hx, Wx = search_x.shape
    Nk, Ns = Hz * Wz, Hx * Wx
    z = kernel_z.reshape(B, C, Nk).astype(matmul_dtype).astype(jnp.float32)
    x = search_x.reshape(B, C, Ns).astype(matmul_dtype).astype(jnp.float32)
    corr = jnp.einsum("bck,bcs->bks", z, x)
    gap = corr.mean(axis=-1)                                       # (B, Nk)
    h = jnp.maximum(gap @ params["w1"].T + params["b1"], 0.0)
    att = jax.nn.sigmoid(h @ params["w2"].T + params["b2"])        # (B, Nk)
    corr = corr * att[:, :, None]
    out = jnp.einsum("ok,bks->bos", params["w_adj"], corr) \
        + params["b_adj"][None, :, None]
    return out.reshape(B, -1, Hx, Wx)


if __name__ == "__main__":
    # Small shapes consistent with the module: num_kernel = Hz*Wz of the template.
    B, C = 2, 16
    Hz = Wz = 4            # -> num_kernel = 16
    Hx = Wx = 8            # -> search spatial 8x8 (Ns=64, lane-padded to 128)
    num_kernel = Hz * Wz
    adj_channel = 32

    key = jax.random.PRNGKey(0)
    kz, kx, kp = jax.random.split(key, 3)
    kernel_z = jax.random.normal(kz, (B, C, Hz, Wz), jnp.float32)
    search_x = jax.random.normal(kx, (B, C, Hx, Wx), jnp.float32)
    params = init_params(kp, num_kernel, adj_channel)

    oup = pw_corr_adj(kernel_z, search_x, params)
    y = jax.block_until_ready(oup["cls"])

    # Tight check: reference with the same bf16 rounding of the matmul inputs.
    ref_bf16 = _reference(kernel_z, search_x, params, matmul_dtype=jnp.bfloat16)
    # Loose check: pure-f32 reference (bounds the bf16 quantization error).
    ref_f32 = _reference(kernel_z, search_x, params, matmul_dtype=jnp.float32)

    assert y.shape == (B, adj_channel, Hx, Wx)
    assert jnp.allclose(y, ref_bf16, atol=1e-2, rtol=1e-2)
    assert jnp.allclose(y, ref_f32, atol=6e-2, rtol=6e-2)
    assert oup["reg"] is oup["cls"]

    print("KERNEL_OK")
</pallas_src>

<mosaic_0001>
module attributes {stable_mosaic.version = 11 : i64} {
  func.func @_pw_corr_adj_kernel(%arg0: i32, %arg1: memref<1x16x16xbf16, #tpu.memory_space<vmem>>, %arg2: memref<1x16x128xbf16, #tpu.memory_space<vmem>>, %arg3: memref<16x16xf32, #tpu.memory_space<vmem>>, %arg4: memref<1x16xf32, #tpu.memory_space<vmem>>, %arg5: memref<16x16xf32, #tpu.memory_space<vmem>>, %arg6: memref<1x16xf32, #tpu.memory_space<vmem>>, %arg7: memref<32x16xf32, #tpu.memory_space<vmem>>, %arg8: memref<32x1xf32, #tpu.memory_space<vmem>>, %arg9: memref<1x32x128xf32, #tpu.memory_space<vmem>>) attributes {dimension_semantics = [#tpu.dimension_semantics<parallel>], iteration_bounds = array<i64: 2>, scalar_prefetch = 0 : i64, scratch_operands = 0 : i64, tpu.core_type = #tpu.core_type<tc>, window_params = [{transform_indices = @transform_0, window_bounds = array<i64: 1, 16, 16>}, {transform_indices = @transform_1, window_bounds = array<i64: 1, 16, 128>}, {pipeline_mode = #tpu.pipeline_mode<synchronous>, transform_indices = @transform_2, window_bounds = array<i64: 16, 16>}, {pipeline_mode = #tpu.pipeline_mode<synchronous>, transform_indices = @transform_3, window_bounds = array<i64: 1, 16>}, {pipeline_mode = #tpu.pipeline_mode<synchronous>, transform_indices = @transform_4, window_bounds = array<i64: 16, 16>}, {pipeline_mode = #tpu.pipeline_mode<synchronous>, transform_indices = @transform_5, window_bounds = array<i64: 1, 16>}, {pipeline_mode = #tpu.pipeline_mode<synchronous>, transform_indices = @transform_6, window_bounds = array<i64: 32, 16>}, {pipeline_mode = #tpu.pipeline_mode<synchronous>, transform_indices = @transform_7, window_bounds = array<i64: 32, 1>}, {transform_indices = @transform_8, window_bounds = array<i64: 1, 32, 128>}]} {
    %c0 = arith.constant 0 : index
    %c0_0 = arith.constant 0 : index
    %c0_1 = arith.constant 0 : index
    %0 = vector.load %arg1[%c0, %c0_0, %c0_1] : memref<1x16x16xbf16, #tpu.memory_space<vmem>>, vector<1x16x16xbf16>
    %c0_2 = arith.constant 0 : index
    %c0_3 = arith.constant 0 : index
    %c0_4 = arith.constant 0 : index
    %1 = vector.load %arg2[%c0_2, %c0_3, %c0_4] : memref<1x16x128xbf16, #tpu.memory_space<vmem>>, vector<1x16x128xbf16>
    %cst = arith.constant dense<0.000000e+00> : vector<1x16x128xf32>
    %2 = tpu.matmul %0, %1, %cst {dimension_numbers = #tpu.dot_dimension_numbers<[2], [1], [1], [2], [0, 0, 0, 1, 1, 2], [0], [0]>} : vector<1x16x16xbf16>, vector<1x16x128xbf16>, vector<1x16x128xf32> -> vector<1x16x128xf32>
    %cst_5 = arith.constant dense<0.000000e+00> : vector<1x16xf32>
    %3 = vector.multi_reduction <add>, %2, %cst_5 [2] : vector<1x16x128xf32> to vector<1x16xf32>
    %cst_6 = arith.constant 1.562500e-02 : f32
    %4 = vector.broadcast %cst_6 : f32 to vector<1x16xf32>
    %5 = arith.mulf %3, %4 : vector<1x16xf32>
    %c0_7 = arith.constant 0 : index
    %c0_8 = arith.constant 0 : index
    %6 = vector.load %arg3[%c0_7, %c0_8] : memref<16x16xf32, #tpu.memory_space<vmem>>, vector<16x16xf32>
    %cst_9 = arith.constant dense<0.000000e+00> : vector<1x16xf32>
    %7 = tpu.matmul %5, %6, %cst_9 {dimension_numbers = #tpu.dot_dimension_numbers<[1], [0], [0], [1], [0, 0, 1, 1], [], []>} : vector<1x16xf32>, vector<16x16xf32>, vector<1x16xf32> -> vector<1x16xf32>
    %c0_10 = arith.constant 0 : index
    %c0_11 = arith.constant 0 : index
    %8 = vector.load %arg4[%c0_10, %c0_11] : memref<1x16xf32, #tpu.memory_space<vmem>>, vector<1x16xf32>
    %9 = arith.addf %7, %8 : vector<1x16xf32>
    %cst_12 = arith.constant 0.000000e+00 : f32
    %10 = vector.broadcast %cst_12 : f32 to vector<1x16xf32>
    %11 = arith.maximumf %9, %10 : vector<1x16xf32>
    %c0_13 = arith.constant 0 : index
    %c0_14 = arith.constant 0 : index
    %12 = vector.load %arg5[%c0_13, %c0_14] : memref<16x16xf32, #tpu.memory_space<vmem>>, vector<16x16xf32>
    %cst_15 = arith.constant dense<0.000000e+00> : vector<1x16xf32>
    %13 = tpu.matmul %11, %12, %cst_15 {dimension_numbers = #tpu.dot_dimension_numbers<[1], [0], [0], [1], [0, 0, 1, 1], [], []>} : vector<1x16xf32>, vector<16x16xf32>, vector<1x16xf32> -> vector<1x16xf32>
    %c0_16 = arith.constant 0 : index
    %c0_17 = arith.constant 0 : index
    %14 = vector.load %arg6[%c0_16, %c0_17] : memref<1x16xf32, #tpu.memory_space<vmem>>, vector<1x16xf32>
    %15 = arith.addf %13, %14 : vector<1x16xf32>
    %16 = arith.negf %15 : vector<1x16xf32>
    %17 = math.exp %16 : vector<1x16xf32>
    %cst_18 = arith.constant 1.000000e+00 : f32
    %18 = vector.broadcast %cst_18 : f32 to vector<1x16xf32>
    %19 = arith.addf %18, %17 : vector<1x16xf32>
    %20 = arith.divf %18, %19 : vector<1x16xf32>
    %c0_19 = arith.constant 0 : index
    %c0_20 = arith.constant 0 : index
    %21 = vector.load %arg7[%c0_19, %c0_20] : memref<32x16xf32, #tpu.memory_space<vmem>>, vector<32x16xf32>
    %22 = vector.shape_cast %21 : vector<32x16xf32> to vector<1x32x16xf32>
    %23 = vector.shape_cast %20 : vector<1x16xf32> to vector<1x1x16xf32>
    %24 = vector.broadcast %23 : vector<1x1x16xf32> to vector<1x32x16xf32>
    %25 = arith.mulf %22, %24 : vector<1x32x16xf32>
    %cst_21 = arith.constant dense<0.000000e+00> : vector<1x32x128xf32>
    %26 = tpu.matmul %25, %2, %cst_21 {dimension_numbers = #tpu.dot_dimension_numbers<[2], [1], [1], [2], [0, 0, 0, 1, 1, 2], [0], [0]>} : vector<1x32x16xf32>, vector<1x16x128xf32>, vector<1x32x128xf32> -> vector<1x32x128xf32>
    %c0_22 = arith.constant 0 : index
    %c0_23 = arith.constant 0 : index
    %27 = vector.load %arg8[%c0_22, %c0_23] : memref<32x1xf32, #tpu.memory_space<vmem>>, vector<32x1xf32>
    %28 = vector.shape_cast %27 : vector<32x1xf32> to vector<1x32x1xf32>
    %29 = vector.broadcast %28 : vector<1x32x1xf32> to vector<1x32x128xf32>
    %30 = arith.addf %26, %29 : vector<1x32x128xf32>
    %c0_24 = arith.constant 0 : index
    %c0_25 = arith.constant 0 : index
    %c0_26 = arith.constant 0 : index
    %31 = vector.load %arg9[%c0_24, %c0_25, %c0_26] : memref<1x32x128xf32, #tpu.memory_space<vmem>>, vector<1x32x128xf32>
    tpu.vector_store %arg9[%c0_24, %c0_25, %c0_26], %30 {strides = array<i32>} : memref<1x32x128xf32, #tpu.memory_space<vmem>>, vector<1x32x128xf32>,
    return
  }
  func.func @transform_0(%arg0: i32) -> (i32, i32, i32) {
    %c0_i32 = arith.constant 0 : i32
    %c0_i32_0 = arith.constant 0 : i32
    %c0_i32_1 = arith.constant 0 : i32
    return %arg0, %c0_i32, %c0_i32_0 : i32, i32, i32
  }
  func.func @transform_1(%arg0: i32) -> (i32, i32, i32) {
    %c0_i32 = arith.constant 0 : i32
    %c0_i32_0 = arith.constant 0 : i32
    %c0_i32_1 = arith.constant 0 : i32
    return %arg0, %c0_i32, %c0_i32_0 : i32, i32, i32
  }
  func.func @transform_2(%arg0: i32) -> (i32, i32) {
    %c0_i32 = arith.constant 0 : i32
    %c0_i32_0 = arith.constant 0 : i32
    %c0_i32_1 = arith.constant 0 : i32
    return %c0_i32, %c0_i32_0 : i32, i32
  }
  func.func @transform_3(%arg0: i32) -> (i32, i32) {
    %c0_i32 = arith.constant 0 : i32
    %c0_i32_0 = arith.constant 0 : i32
    %c0_i32_1 = arith.constant 0 : i32
    return %c0_i32, %c0_i32_0 : i32, i32
  }
  func.func @transform_4(%arg0: i32) -> (i32, i32) {
    %c0_i32 = arith.constant 0 : i32
    %c0_i32_0 = arith.constant 0 : i32
    %c0_i32_1 = arith.constant 0 : i32
    return %c0_i32, %c0_i32_0 : i32, i32
  }
  func.func @transform_5(%arg0: i32) -> (i32, i32) {
    %c0_i32 = arith.constant 0 : i32
    %c0_i32_0 = arith.constant 0 : i32
    %c0_i32_1 = arith.constant 0 : i32
    return %c0_i32, %c0_i32_0 : i32, i32
  }
  func.func @transform_6(%arg0: i32) -> (i32, i32) {
    %c0_i32 = arith.constant 0 : i32
    %c0_i32_0 = arith.constant 0 : i32
    %c0_i32_1 = arith.constant 0 : i32
    return %c0_i32, %c0_i32_0 : i32, i32
  }
  func.func @transform_7(%arg0: i32) -> (i32, i32) {
    %c0_i32 = arith.constant 0 : i32
    %c0_i32_0 = arith.constant 0 : i32
    %c0_i32_1 = arith.constant 0 : i32
    return %c0_i32, %c0_i32_0 : i32, i32
  }
  func.func @transform_8(%arg0: i32) -> (i32, i32, i32) {
    %c0_i32 = arith.constant 0 : i32
    %c0_i32_0 = arith.constant 0 : i32
    %c0_i32_1 = arith.constant 0 : i32
    return %arg0, %c0_i32, %c0_i32_0 : i32, i32, i32
  }
}

</mosaic_0001>

<llo_original>
// kernel: tpu_custom_call.1
$region0: #{tpu_custom_call.1}
  #allocation0 [shape = 'u32[]', space=smem, size = 0x4, offset = 0x4, fixed_abs, tag = 'smem constant byte address 0x4 - core index']
  #allocation1 [shape = 'u32[144,128]{1,0:T(1,128)}', space=vmem, size = 0x12000, scoped, tag = 'internal scratch']
  %s0 = inlined_call_operand.vmem [shape: bf16[2,16,16], index: 0, kind: input, shape index: {}]
  %s1 = inlined_call_operand.vmem [shape: bf16[2,16,128], index: 1, kind: input, shape index: {}]
  %s2 = inlined_call_operand.vmem [shape: f32[16,16], index: 2, kind: input, shape index: {}]
  %s3 = inlined_call_operand.vmem [shape: f32[1,16], index: 3, kind: input, shape index: {}]
  %s4 = inlined_call_operand.vmem [shape: f32[16,16], index: 4, kind: input, shape index: {}]
  %s5 = inlined_call_operand.vmem [shape: f32[1,16], index: 5, kind: input, shape index: {}]
  %s6 = inlined_call_operand.vmem [shape: f32[32,16], index: 6, kind: input, shape index: {}]
  %s7 = inlined_call_operand.vmem [shape: f32[32,1], index: 7, kind: input, shape index: {}]
  %s8 = inlined_call_operand.hbm [shape: f32[2,32,128], index: 8, kind: output, shape index: {}]
  %s9 = sld [smem:[#allocation0]]
  $region65: #{tpu_custom_call.1} parent=0
    _
  %s11 = ssub.s32 1, %s9
  %s12 = scalar_select 0, %s11, %s9
  $region1: #{tpu_custom_call.1} parent=0
    #allocation2 [shape = 'u8[32768]{0}', space=vmem, size = 0x8000, scoped, tag = 'output window, operand 0']
    #allocation3 [shape = 's32[2]{0}', space=sflag, size = 0x8, scoped, tag = 'scoped memory for tpu_custom_call.1']
    %13 = vsyncpa [#allocation3], 0
    %s14 = scalar_lea.sflag [#allocation3], 1
    %15 = vsyncpa %s14, 0
    loop: start=0, step=1, limit=4
    $region2: #{tpu_custom_call.1} parent=1 // loop_pre_header
      _
    $region3: #{tpu_custom_call.1} parent=1 // loop_header
      %s17 = sphi 0, %s21
      %p18 = scmp.ge.s32.totalorder %s17, 4
      %s27 = sphi 0, %s29
      %s30 = sphi 0, %s27
      %s31 = sphi 0, %s30
      %s47 = sphi 0, %s31
      %s53 = sphi 0, %s55
      %s56 = sphi 0, %s53
      %s57 = sphi 0, %s56
      %s73 = sphi 0, %s57
      %s77 = sphi 0, %s77
      %s79 = sphi 0, %s77
      %s80 = sphi 0, %s79
      %s94 = sphi 0, %s80
      %s98 = sphi 0, %s98
      %s100 = sphi 0, %s98
      %s101 = sphi 0, %s100
      %s115 = sphi 0, %s101
      %s119 = sphi 0, %s119
      %s121 = sphi 0, %s119
      %s122 = sphi 0, %s121
      %s136 = sphi 0, %s122
      %s140 = sphi 0, %s140
      %s142 = sphi 0, %s140
      %s143 = sphi 0, %s142
      %s157 = sphi 0, %s143
      %s161 = sphi 0, %s161
      %s163 = sphi 0, %s161
      %s164 = sphi 0, %s163
      %s178 = sphi 0, %s164
      %s182 = sphi 0, %s182
      %s184 = sphi 0, %s182
      %s185 = sphi 0, %s184
      %s199 = sphi 0, %s185
      %s205 = sphi 0, %s207
      %s208 = sphi 0, %s205
      %s209 = sphi 0, %s208
      %s225 = sphi 0, %s209
    $region4: #{tpu_custom_call.1} parent=1 // loop_header_branch
      %20 = sbr.rel (%p18) target = $region8
    $region5: #{tpu_custom_call.1} parent=1 // loop_body
      %s22 = ssub.s32 %s17, 1
      %s23 = ssub.s32 %s17, 2
      %s24 = sadd.s32 %s17, 1
      %s25 = ssub.s32 %s17, %s24
      %p26 = scmp.eq.s32.totalorder %s25, 0
      %s28 = sadd.s32 %s27, 1
      %s29 = scalar_select %p26, %s27, %s28
      %p32 = pneg %p26
      %p33 = scmp.eq.s32.totalorder %s17, 1
      %p34 = por %p32, %p33
      %p35 = scmp.ne.s32.totalorder %s27, %s30
      %p36 = scmp.eq.s32.totalorder %s17, 0
      %p37 = por %p35, %p36
      %p38 = scmp.ne.s32.totalorder %s27, %s30
      %p39 = scmp.eq.s32.totalorder %s22, 1
      %p40 = por %p38, %p39
      %p41 = scmp.ne.s32.totalorder %s30, %s31
      %p42 = scmp.eq.s32.totalorder %s22, 0
      %p43 = por %p41, %p42
      %p44 = scmp.ne.s32.totalorder %s30, %s31
      %p45 = scmp.eq.s32.totalorder %s23, 1
      %p46 = por %p44, %p45
      %p48 = scmp.ne.s32.totalorder %s31, %s47
      %p49 = scmp.eq.s32.totalorder %s23, 0
      %p50 = por %p48, %p49
      %s51 = ssub.s32 %s17, %s24
      %p52 = scmp.eq.s32.totalorder %s51, 0
      %s54 = sadd.s32 %s53, 1
      %s55 = scalar_select %p52, %s53, %s54
      %p58 = pneg %p52
      %p59 = scmp.eq.s32.totalorder %s17, 1
      %p60 = por %p58, %p59
      %p61 = scmp.ne.s32.totalorder %s53, %s56
      %p62 = scmp.eq.s32.totalorder %s17, 0
      %p63 = por %p61, %p62
      %p64 = scmp.ne.s32.totalorder %s53, %s56
      %p65 = scmp.eq.s32.totalorder %s22, 1
      %p66 = por %p64, %p65
      %p67 = scmp.ne.s32.totalorder %s56, %s57
      %p68 = scmp.eq.s32.totalorder %s22, 0
      %p69 = por %p67, %p68
      %p70 = scmp.ne.s32.totalorder %s56, %s57
      %p71 = scmp.eq.s32.totalorder %s23, 1
      %p72 = por %p70, %p71
      %p74 = scmp.ne.s32.totalorder %s57, %s73
      %p75 = scmp.eq.s32.totalorder %s23, 0
      %p76 = por %p74, %p75
      %s78 = sadd.s32 %s77, 1
      %p81 = scmp.eq.s32.totalorder %s17, 1
      %p82 = scmp.ne.s32.totalorder %s77, %s79
      %p83 = scmp.eq.s32.totalorder %s17, 0
      %p84 = por %p82, %p83
      %p85 = scmp.ne.s32.totalorder %s77, %s79
      %p86 = scmp.eq.s32.totalorder %s22, 1
      %p87 = por %p85, %p86
      %p88 = scmp.ne.s32.totalorder %s79, %s80
      %p89 = scmp.eq.s32.totalorder %s22, 0
      %p90 = por %p88, %p89
      %p91 = scmp.ne.s32.totalorder %s79, %s80
      %p92 = scmp.eq.s32.totalorder %s23, 1
      %p93 = por %p91, %p92
      %p95 = scmp.ne.s32.totalorder %s80, %s94
      %p96 = scmp.eq.s32.totalorder %s23, 0
      %p97 = por %p95, %p96
      %s99 = sadd.s32 %s98, 1
      %p102 = scmp.eq.s32.totalorder %s17, 1
      %p103 = scmp.ne.s32.totalorder %s98, %s100
      %p104 = scmp.eq.s32.totalorder %s17, 0
      %p105 = por %p103, %p104
      %p106 = scmp.ne.s32.totalorder %s98, %s100
      %p107 = scmp.eq.s32.totalorder %s22, 1
      %p108 = por %p106, %p107
      %p109 = scmp.ne.s32.totalorder %s100, %s101
      %p110 = scmp.eq.s32.totalorder %s22, 0
      %p111 = por %p109, %p110
      %p112 = scmp.ne.s32.totalorder %s100, %s101
      %p113 = scmp.eq.s32.totalorder %s23, 1
      %p114 = por %p112, %p113
      %p116 = scmp.ne.s32.totalorder %s101, %s115
      %p117 = scmp.eq.s32.totalorder %s23, 0
      %p118 = por %p116, %p117
      %s120 = sadd.s32 %s119, 1
      %p123 = scmp.eq.s32.totalorder %s17, 1
      %p124 = scmp.ne.s32.totalorder %s119, %s121
      %p125 = scmp.eq.s32.totalorder %s17, 0
      %p126 = por %p124, %p125
      %p127 = scmp.ne.s32.totalorder %s119, %s121
      %p128 = scmp.eq.s32.totalorder %s22, 1
      %p129 = por %p127, %p128
      %p130 = scmp.ne.s32.totalorder %s121, %s122
      %p131 = scmp.eq.s32.totalorder %s22, 0
      %p132 = por %p130, %p131
      %p133 = scmp.ne.s32.totalorder %s121, %s122
      %p134 = scmp.eq.s32.totalorder %s23, 1
      %p135 = por %p133, %p134
      %p137 = scmp.ne.s32.totalorder %s122, %s136
      %p138 = scmp.eq.s32.totalorder %s23, 0
      %p139 = por %p137, %p138
      %s141 = sadd.s32 %s140, 1
      %p144 = scmp.eq.s32.totalorder %s17, 1
      %p145 = scmp.ne.s32.totalorder %s140, %s142
      %p146 = scmp.eq.s32.totalorder %s17, 0
      %p147 = por %p145, %p146
      %p148 = scmp.ne.s32.totalorder %s140, %s142
      %p149 = scmp.eq.s32.totalorder %s22, 1
      %p150 = por %p148, %p149
      %p151 = scmp.ne.s32.totalorder %s142, %s143
      %p152 = scmp.eq.s32.totalorder %s22, 0
      %p153 = por %p151, %p152
      %p154 = scmp.ne.s32.totalorder %s142, %s143
      %p155 = scmp.eq.s32.totalorder %s23, 1
      %p156 = por %p154, %p155
      %p158 = scmp.ne.s32.totalorder %s143, %s157
      %p159 = scmp.eq.s32.totalorder %s23, 0
      %p160 = por %p158, %p159
      %s162 = sadd.s32 %s161, 1
      %p165 = scmp.eq.s32.totalorder %s17, 1
      %p166 = scmp.ne.s32.totalorder %s161, %s163
      %p167 = scmp.eq.s32.totalorder %s17, 0
      %p168 = por %p166, %p167
      %p169 = scmp.ne.s32.totalorder %s161, %s163
      %p170 = scmp.eq.s32.totalorder %s22, 1
      %p171 = por %p169, %p170
      %p172 = scmp.ne.s32.totalorder %s163, %s164
      %p173 = scmp.eq.s32.totalorder %s22, 0
      %p174 = por %p172, %p173
      %p175 = scmp.ne.s32.totalorder %s163, %s164
      %p176 = scmp.eq.s32.totalorder %s23, 1
      %p177 = por %p175, %p176
      %p179 = scmp.ne.s32.totalorder %s164, %s178
      %p180 = scmp.eq.s32.totalorder %s23, 0
      %p181 = por %p179, %p180
      %s183 = sadd.s32 %s182, 1
      %p186 = scmp.eq.s32.totalorder %s17, 1
      %p187 = scmp.ne.s32.totalorder %s182, %s184
      %p188 = scmp.eq.s32.totalorder %s17, 0
      %p189 = por %p187, %p188
      %p190 = scmp.ne.s32.totalorder %s182, %s184
      %p191 = scmp.eq.s32.totalorder %s22, 1
      %p192 = por %p190, %p191
      %p193 = scmp.ne.s32.totalorder %s184, %s185
      %p194 = scmp.eq.s32.totalorder %s22, 0
      %p195 = por %p193, %p194
      %p196 = scmp.ne.s32.totalorder %s184, %s185
      %p197 = scmp.eq.s32.totalorder %s23, 1
      %p198 = por %p196, %p197
      %p200 = scmp.ne.s32.totalorder %s185, %s199
      %p201 = scmp.eq.s32.totalorder %s23, 0
      %p202 = por %p200, %p201
      %s203 = ssub.s32 %s17, %s24
      %p204 = scmp.eq.s32.totalorder %s203, 0
      %s206 = sadd.s32 %s205, 1
      %s207 = scalar_select %p204, %s205, %s206
      %p210 = pneg %p204
      %p211 = scmp.eq.s32.totalorder %s17, 1
      %p212 = por %p210, %p211
      %p213 = scmp.ne.s32.totalorder %s205, %s208
      %p214 = scmp.eq.s32.totalorder %s17, 0
      %p215 = por %p213, %p214
      %p216 = scmp.ne.s32.totalorder %s205, %s208
      %p217 = scmp.eq.s32.totalorder %s22, 1
      %p218 = por %p216, %p217
      %p219 = scmp.ne.s32.totalorder %s208, %s209
      %p220 = scmp.eq.s32.totalorder %s22, 0
      %p221 = por %p219, %p220
      %p222 = scmp.ne.s32.totalorder %s208, %s209
      %p223 = scmp.eq.s32.totalorder %s23, 1
      %p224 = por %p222, %p223
      %p226 = scmp.ne.s32.totalorder %s209, %s225
      %p227 = scmp.eq.s32.totalorder %s23, 0
      %p228 = por %p226, %p227
      %p229 = scmp.le.s32.totalorder 1, %s17
      %p230 = scmp.lt.s32.totalorder %s17, 3
      %p231 = pnand %p229, %p230
      %p232 = pneg %p231
      // Predicated region
      $region9: #{tpu_custom_call.1} parent=5 // pred_check
        _
      $region10: #{tpu_custom_call.1} parent=5 // pred_check_branch
        %234 = sbr.rel (%p231) target = $region12
      $region11: #{tpu_custom_call.1} parent=5 // pred_region
        %s235 = ssub.s32 %s17, 1
        // Predicated region
        $region13: #{tpu_custom_call.1} parent=11 // pred_check
          %p236 = pneg %p90
        $region14: #{tpu_custom_call.1} parent=11 // pred_check_branch
          %238 = sbr.rel (%p236) target = $region16
        $region15: #{tpu_custom_call.1} parent=11 // pred_region
          _
        $region16: #{tpu_custom_call.1} parent=11 // pred_fallthru
          _
        // Predicated region
        $region17: #{tpu_custom_call.1} parent=11 // pred_check
          %p239 = pneg %p111
        $region18: #{tpu_custom_call.1} parent=11 // pred_check_branch
          %241 = sbr.rel (%p239) target = $region20
        $region19: #{tpu_custom_call.1} parent=11 // pred_region
          _
        $region20: #{tpu_custom_call.1} parent=11 // pred_fallthru
          _
        // Predicated region
        $region21: #{tpu_custom_call.1} parent=11 // pred_check
          %p242 = pneg %p132
        $region22: #{tpu_custom_call.1} parent=11 // pred_check_branch
          %244 = sbr.rel (%p242) target = $region24
        $region23: #{tpu_custom_call.1} parent=11 // pred_region
          _
        $region24: #{tpu_custom_call.1} parent=11 // pred_fallthru
          _
        // Predicated region
        $region25: #{tpu_custom_call.1} parent=11 // pred_check
          %p245 = pneg %p153
        $region26: #{tpu_custom_call.1} parent=11 // pred_check_branch
          %247 = sbr.rel (%p245) target = $region28
        $region27: #{tpu_custom_call.1} parent=11 // pred_region
          _
        $region28: #{tpu_custom_call.1} parent=11 // pred_fallthru
          _
        // Predicated region
        $region29: #{tpu_custom_call.1} parent=11 // pred_check
          %p248 = pneg %p174
        $region30: #{tpu_custom_call.1} parent=11 // pred_check_branch
          %250 = sbr.rel (%p248) target = $region32
        $region31: #{tpu_custom_call.1} parent=11 // pred_region
          _
        $region32: #{tpu_custom_call.1} parent=11 // pred_fallthru
          _
        // Predicated region
        $region33: #{tpu_custom_call.1} parent=11 // pred_check
          %p251 = pneg %p195
        $region34: #{tpu_custom_call.1} parent=11 // pred_check_branch
          %253 = sbr.rel (%p251) target = $region36
        $region35: #{tpu_custom_call.1} parent=11 // pred_region
          _
        $region36: #{tpu_custom_call.1} parent=11 // pred_fallthru
          _
      $region12: #{tpu_custom_call.1} parent=5 // pred_fallthru
        _
      %p254 = scmp.lt.s32.totalorder %s17, 2
      // Predicated region
      $region37: #{tpu_custom_call.1} parent=5 // pred_check
        %p255 = pneg %p254
      $region38: #{tpu_custom_call.1} parent=5 // pred_check_branch
        %257 = sbr.rel (%p255) target = $region40
      $region39: #{tpu_custom_call.1} parent=5 // pred_region
        // Predicated region
        $region41: #{tpu_custom_call.1} parent=39 // pred_check
          %p258 = pneg %p37
        $region42: #{tpu_custom_call.1} parent=39 // pred_check_branch
          %260 = sbr.rel (%p258) target = $region44
        $region43: #{tpu_custom_call.1} parent=39 // pred_region
          %p261 = scmp.lt.s32.totalorder %s17, 1
          %s262 = scalar_select %p261, %s17, 1
          %s263 = smul.addr %s262, 2
          %s264 = smul.addr %s263, 4
          %s265 = scalar_lea.vmem %s0, %s264
        $region44: #{tpu_custom_call.1} parent=39 // pred_fallthru
          _
        // Predicated region
        $region45: #{tpu_custom_call.1} parent=39 // pred_check
          %p266 = pneg %p63
        $region46: #{tpu_custom_call.1} parent=39 // pred_check_branch
          %268 = sbr.rel (%p266) target = $region48
        $region47: #{tpu_custom_call.1} parent=39 // pred_region
          %p269 = scmp.lt.s32.totalorder %s17, 1
          %s270 = scalar_select %p269, %s17, 1
          %s271 = smul.addr %s270, 2
          %s272 = smul.addr %s271, 4
          %s273 = scalar_lea.vmem %s1, %s272
        $region48: #{tpu_custom_call.1} parent=39 // pred_fallthru
          _
      $region40: #{tpu_custom_call.1} parent=5 // pred_fallthru
        _
      %p274 = scmp.le.s32.totalorder 1, %s17
      %p275 = scmp.lt.s32.totalorder %s17, 3
      %p276 = pnand %p274, %p275
      %p277 = pneg %p276
      // Predicated region
      $region49: #{tpu_custom_call.1} parent=5 // pred_check
        _
      $region50: #{tpu_custom_call.1} parent=5 // pred_check_branch
        %279 = sbr.rel (%p276) target = $region52
      $region51: #{tpu_custom_call.1} parent=5 // pred_region
        %s280 = ssub.s32 %s17, 1
        %p281 = scmp.lt.s32.totalorder %s22, 1
        %s282 = scalar_select %p281, %s22, 1
        %s283 = smul.addr %s282, 2
        %s284 = smul.addr %s283, 4
        %s285 = scalar_lea.vmem %s0, %s284
        %p286 = pneg %p43
        %p287 = pneg %p40
        %p288 = scmp.lt.s32.totalorder %s22, 1
        %s289 = scalar_select %p288, %s22, 1
        %s290 = smul.addr %s289, 2
        %s291 = smul.addr %s290, 4
        %s292 = scalar_lea.vmem %s1, %s291
        %p293 = pneg %p69
        %p294 = pneg %p66
        %p295 = pneg %p90
        %p296 = pneg %p87
        %p297 = pneg %p111
        %p298 = pneg %p108
        %p299 = pneg %p132
        %p300 = pneg %p129
        %p301 = pneg %p153
        %p302 = pneg %p150
        %p303 = pneg %p174
        %p304 = pneg %p171
        %p305 = pneg %p195
        %p306 = pneg %p192
        %p307 = pneg %p221
        %p308 = pneg %p218
        %s309 = sand.u32 %s208, 1
        %s310 = scalar_lea.sflag [#allocation3], %s309
        %s311 = sand.u32 %s208, 1
        %s312 = smul.addr %s311, 32
        %s313 = scalar_lea.vmem [#allocation2], %s312
        %p314 = scmp.lt.s32.totalorder %s22, 1
        %s315 = scalar_select %p314, %s22, 1
        %s316 = smul.addr %s315, 2
        %s317 = smul.addr %s316, 4
        %s318 = scalar_lea.vmem %s0, %s317
        %p319 = scmp.lt.s32.totalorder %s22, 1
        %s320 = scalar_select %p319, %s22, 1
        %s321 = smul.addr %s320, 2
        %s322 = smul.addr %s321, 4
        %s323 = scalar_lea.vmem %s1, %s322
        %v325 = vld [vmem:[%s318] sm:$0xf]
        %v326 = vld [vmem:[%s318 + $0x4] sm:$0xf]
        %v327 = vld [vmem:[%s323] sm:$0xf]
        %v328 = vld [vmem:[%s323 + $0x4] sm:$0xf]
        %v331 = vunpack.c.l.b16 %v325
        %v332 = vunpack.c.l.b16 %v326
        %v333 = vpack.c.b16 %v332, %v331
        %v336 = vunpack.c.l.b16 %v327
        %v337 = vunpack.c.l.b16 %v328
        %v338 = vpack.c.b16 %v337, %v336
        %vm340 = vcmask 130048
        %v342 = vsel %vm340, %v333, 0
        %344 = vmatprep.subr.bf16.mxu0 0
        %345 = vmatpush1.bf16.msra.mxu0 %v338
        %346 = vmatprep.subr.bf16.mxu0 0
        %347 = vmatpush1.bf16.msra.mxu0 0
        %348 = vmatprep.subr.bf16.mxu0 0
        %349 = vmatpush1.bf16.msra.mxu0 0
        %350 = vmatprep.subr.bf16.mxu0 0
        %351 = vmatpush1.bf16.msra.mxu0 0
        %352 = vmatprep.subr.bf16.mxu0 0
        %353 = vmatpush1.bf16.msra.mxu0 0
        %354 = vmatprep.subr.bf16.mxu0 0
        %355 = vmatpush1.bf16.msra.mxu0 0
        %356 = vmatprep.subr.bf16.mxu0 0
        %357 = vmatpush1.bf16.msra.mxu0 0
        %358 = vmatprep.subr.bf16.mxu0 0
        %359 = vmatpush1.bf16.msra.mxu0 0
        %360 = vmatprep.subr.bf16.mxu0 0
        %361 = vmatpush1.bf16.msra.mxu0 0
        %362 = vmatprep.subr.bf16.mxu0 0
        %363 = vmatpush1.bf16.msra.mxu0 0
        %364 = vmatprep.subr.bf16.mxu0 0
        %365 = vmatpush1.bf16.msra.mxu0 0
        %366 = vmatprep.subr.bf16.mxu0 0
        %367 = vmatpush1.bf16.msra.mxu0 0
        %368 = vmatprep.subr.bf16.mxu0 0
        %369 = vmatpush1.bf16.msra.mxu0 0
        %370 = vmatprep.subr.bf16.mxu0 0
        %371 = vmatpush1.bf16.msra.mxu0 0
        %372 = vmatprep.subr.bf16.mxu0 0
        %373 = vmatpush1.bf16.msra.mxu0 0
        %374 = vmatprep.subr.bf16.mxu0 0
        %375 = vmatpush1.bf16.msra.mxu0 0
        %376 = vmatprep.mubr.bf16.mxu0 0
        %377 = vmatmul.mubr.bf16.gmra.mrb[0].mxu0 %v342
        %v378 = vpop.f32.mrb[0].mxu0
        %v379 = vadd.f32 0.0, %v378
        %v380 = vpop.f32.mrb[0].mxu0
        %v381 = vpop.f32.mrb[0].mxu0
        %v382 = vadd.f32 0.0, %v381
        %v383 = vpop.f32.mrb[0].mxu0
        %384 = vdwg.mxu0
        %385 = vadd.xlane.f32.xlu0 %v379
        %v386 = vpop.xlane.xlu0 %385
        %387 = vadd.xlane.f32.xlu0 %v382
        %v388 = vpop.xlane.xlu0 %387
        %v389 = vmul.f32 %v386, 0.015625
        %v390 = vmul.f32 %v388, 0.015625
        %v391 = vld [vmem:[%s2] sm:$0xff]
        %v392 = vld [vmem:[%s2 + $0x8] sm:$0xff]
        %v393 = vld [vmem:[%s3] sm:$0x1]
        %v396 = vlaneseq
        %v397 = vand.u32 %v396, 127
        %v398 = vlaneseq
        %v399 = vshrl.u32 %v398, 7
        %v400 = vsub.s32 %v397, %v399
        %v401 = vrot.slane %v389, %v400
        %v402 = vadd.s32 %v397, 4294967288
        %v403 = vlaneseq
        %v404 = vshrl.u32 %v403, 7
        %v405 = vsub.s32 %v402, %v404
        %v406 = vrot.slane %v390, %v405
        %vm407 = vcmask 130112
        %v408 = vsel %vm407, %v406, %v401
        %v409 = vsel %vm340, %v408, 0
        %411 = vmatprep.subr.mxu0 0.0
        %412 = vmatpush1.msra.mxu0 %v391
        %413 = vmatprep.subr.mxu0 0.0
        %414 = vmatpush1.msra.mxu0 %v392
        %415 = vmatprep.subr.mxu0 0.0
        %416 = vmatpush1.msra.mxu0 0.0
        %417 = vmatprep.subr.mxu0 0.0
        %418 = vmatpush1.msra.mxu0 0.0
        %419 = vmatprep.subr.mxu0 0.0
        %420 = vmatpush1.msra.mxu0 0.0
        %421 = vmatprep.subr.mxu0 0.0
        %422 = vmatpush1.msra.mxu0 0.0
        %423 = vmatprep.subr.mxu0 0.0
        %424 = vmatpush1.msra.mxu0 0.0
        %425 = vmatprep.subr.mxu0 0.0
        %426 = vmatpush1.msra.mxu0 0.0
        %427 = vmatprep.subr.mxu0 0.0
        %428 = vmatpush1.msra.mxu0 0.0
        %429 = vmatprep.subr.mxu0 0.0
        %430 = vmatpush1.msra.mxu0 0.0
        %431 = vmatprep.subr.mxu0 0.0
        %432 = vmatpush1.msra.mxu0 0.0
        %433 = vmatprep.subr.mxu0 0.0
        %434 = vmatpush1.msra.mxu0 0.0
        %435 = vmatprep.subr.mxu0 0.0
        %436 = vmatpush1.msra.mxu0 0.0
        %437 = vmatprep.subr.mxu0 0.0
        %438 = vmatpush1.msra.mxu0 0.0
        %439 = vmatprep.subr.mxu0 0.0
        %440 = vmatpush1.msra.mxu0 0.0
        %441 = vmatprep.subr.mxu0 0.0
        %442 = vmatpush1.msra.mxu0 0.0
        %443 = vmatprep.subr.mxu0 0.0
        %444 = vmatpush1.msra.mxu0 0.0
        %445 = vmatprep.subr.mxu0 0.0
        %446 = vmatpush1.msra.mxu0 0.0
        %447 = vmatprep.subr.mxu0 0.0
        %448 = vmatpush1.msra.mxu0 0.0
        %449 = vmatprep.subr.mxu0 0.0
        %450 = vmatpush1.msra.mxu0 0.0
        %451 = vmatprep.subr.mxu0 0.0
        %452 = vmatpush1.msra.mxu0 0.0
        %453 = vmatprep.subr.mxu0 0.0
        %454 = vmatpush1.msra.mxu0 0.0
        %455 = vmatprep.subr.mxu0 0.0
        %456 = vmatpush1.msra.mxu0 0.0
        %457 = vmatprep.subr.mxu0 0.0
        %458 = vmatpush1.msra.mxu0 0.0
        %459 = vmatprep.subr.mxu0 0.0
        %460 = vmatpush1.msra.mxu0 0.0
        %461 = vmatprep.subr.mxu0 0.0
        %462 = vmatpush1.msra.mxu0 0.0
        %463 = vmatprep.subr.mxu0 0.0
        %464 = vmatpush1.msra.mxu0 0.0
        %465 = vmatprep.subr.mxu0 0.0
        %466 = vmatpush1.msra.mxu0 0.0
        %467 = vmatprep.subr.mxu0 0.0
        %468 = vmatpush1.msra.mxu0 0.0
        %469 = vmatprep.subr.mxu0 0.0
        %470 = vmatpush1.msra.mxu0 0.0
        %471 = vmatprep.subr.mxu0 0.0
        %472 = vmatpush1.msra.mxu0 0.0
        %473 = vmatprep.subr.mxu0 0.0
        %474 = vmatpush1.msra.mxu0 0.0
        %475 = vmatprep.mubr.f32.mxu0 0.0
        %476 = vmatmul.mubr.f32.gmra.mrb[0].mxu0 %v409
        %v477 = vpop.f32.mrb[0].mxu0
        %v478 = vadd.f32 %v393, %v477
        %v479 = vpop.f32.mrb[0].mxu0
        %480 = vdwg.mxu0
        %v481 = vmax.f32 %v478, 0.0
        %v482 = vld [vmem:[%s4] sm:$0xff]
        %v483 = vld [vmem:[%s4 + $0x8] sm:$0xff]
        %v484 = vld [vmem:[%s5] sm:$0x1]
        %v486 = vsel %vm340, %v481, 0
        %488 = vmatprep.subr.mxu0 0.0
        %489 = vmatpush1.msra.mxu0 %v482
        %490 = vmatprep.subr.mxu0 0.0
        %491 = vmatpush1.msra.mxu0 %v483
        %492 = vmatprep.subr.mxu0 0.0
        %493 = vmatpush1.msra.mxu0 0.0
        %494 = vmatprep.subr.mxu0 0.0
        %495 = vmatpush1.msra.mxu0 0.0
        %496 = vmatprep.subr.mxu0 0.0
        %497 = vmatpush1.msra.mxu0 0.0
        %498 = vmatprep.subr.mxu0 0.0
        %499 = vmatpush1.msra.mxu0 0.0
        %500 = vmatprep.subr.mxu0 0.0
        %501 = vmatpush1.msra.mxu0 0.0
        %502 = vmatprep.subr.mxu0 0.0
        %503 = vmatpush1.msra.mxu0 0.0
        %504 = vmatprep.subr.mxu0 0.0
        %505 = vmatpush1.msra.mxu0 0.0
        %506 = vmatprep.subr.mxu0 0.0
        %507 = vmatpush1.msra.mxu0 0.0
        %508 = vmatprep.subr.mxu0 0.0
        %509 = vmatpush1.msra.mxu0 0.0
        %510 = vmatprep.subr.mxu0 0.0
        %511 = vmatpush1.msra.mxu0 0.0
        %512 = vmatprep.subr.mxu0 0.0
        %513 = vmatpush1.msra.mxu0 0.0
        %514 = vmatprep.subr.mxu0 0.0
        %515 = vmatpush1.msra.mxu0 0.0
        %516 = vmatprep.subr.mxu0 0.0
        %517 = vmatpush1.msra.mxu0 0.0
        %518 = vmatprep.subr.mxu0 0.0
        %519 = vmatpush1.msra.mxu0 0.0
        %520 = vmatprep.subr.mxu0 0.0
        %521 = vmatpush1.msra.mxu0 0.0
        %522 = vmatprep.subr.mxu0 0.0
        %523 = vmatpush1.msra.mxu0 0.0
        %524 = vmatprep.subr.mxu0 0.0
        %525 = vmatpush1.msra.mxu0 0.0
        %526 = vmatprep.subr.mxu0 0.0
        %527 = vmatpush1.msra.mxu0 0.0
        %528 = vmatprep.subr.mxu0 0.0
        %529 = vmatpush1.msra.mxu0 0.0
        %530 = vmatprep.subr.mxu0 0.0
        %531 = vmatpush1.msra.mxu0 0.0
        %532 = vmatprep.subr.mxu0 0.0
        %533 = vmatpush1.msra.mxu0 0.0
        %534 = vmatprep.subr.mxu0 0.0
        %535 = vmatpush1.msra.mxu0 0.0
        %536 = vmatprep.subr.mxu0 0.0
        %537 = vmatpush1.msra.mxu0 0.0
        %538 = vmatprep.subr.mxu0 0.0
        %539 = vmatpush1.msra.mxu0 0.0
        %540 = vmatprep.subr.mxu0 0.0
        %541 = vmatpush1.msra.mxu0 0.0
        %542 = vmatprep.subr.mxu0 0.0
        %543 = vmatpush1.msra.mxu0 0.0
        %544 = vmatprep.subr.mxu0 0.0
        %545 = vmatpush1.msra.mxu0 0.0
        %546 = vmatprep.subr.mxu0 0.0
        %547 = vmatpush1.msra.mxu0 0.0
        %548 = vmatprep.subr.mxu0 0.0
        %549 = vmatpush1.msra.mxu0 0.0
        %550 = vmatprep.subr.mxu0 0.0
        %551 = vmatpush1.msra.mxu0 0.0
        %552 = vmatprep.mubr.f32.mxu0 0.0
        %553 = vmatmul.mubr.f32.gmra.mrb[0].mxu0 %v486
        %v554 = vpop.f32.mrb[0].mxu0
        %v555 = vadd.f32 %v484, %v554
        %v556 = vpop.f32.mrb[0].mxu0
        %557 = vdwg.mxu0
        %v558 = vxor.u32 %v555, 2147483648
        %v559 = vmul.f32 %v558, 1.442695
        %v560 = vpow.pop %v559
        %v561 = vadd.f32 %v560, 1.0
        %v562 = vrcp.pop %v561
        %v563 = vmul.f32 1.0, %v562
        %v564 = vld [vmem:[%s6] sm:$0xff]
        %v565 = vld [vmem:[%s6 + $0x8] sm:$0xff]
        %v566 = vld [vmem:[%s6 + $0x10] sm:$0xff]
        %v567 = vld [vmem:[%s6 + $0x18] sm:$0xff]
        %v568 = vlaneseq
        %v569 = vshrl.u32 %v568, 7
        %v570 = vsub.s32 0, %v569
        %v571 = vrot.slane %v563, %v570
        %v572 = vmul.f32 %v564, %v571
        %v573 = vmul.f32 %v565, %v571
        %v574 = vmul.f32 %v566, %v571
        %v575 = vmul.f32 %v567, %v571
        %v576 = vld [vmem:[%s7] sm:$0xff]
        %v577 = vld [vmem:[%s7 + $0x8] sm:$0xff]
        %v578 = vld [vmem:[%s7 + $0x10] sm:$0xff]
        %v579 = vld [vmem:[%s7 + $0x18] sm:$0xff]
        %581 = vset.pattern.permute.xlu0 0
        %582 = vperm.xlu0 %581, %v576
        %v583 = vpop.permute.xlu0 %582
        %586 = vset.pattern.permute.xlu0 0
        %587 = vperm.xlu0 %586, %v577
        %v588 = vpop.permute.xlu0 %587
        %591 = vset.pattern.permute.xlu0 0
        %592 = vperm.xlu0 %591, %v578
        %v593 = vpop.permute.xlu0 %592
        %596 = vset.pattern.permute.xlu0 0
        %597 = vperm.xlu0 %596, %v579
        %v598 = vpop.permute.xlu0 %597
        %v601 = vsel %vm340, %v572, 0
        %v604 = vsel %vm340, %v573, 0
        %v607 = vsel %vm340, %v574, 0
        %v610 = vsel %vm340, %v575, 0
        %612 = vmatprep.subr.mxu0 0.0
        %613 = vmatpush1.msra.mxu0 %v379
        %614 = vmatprep.subr.mxu0 0.0
        %615 = vmatpush1.msra.mxu0 %v382
        %616 = vmatprep.subr.mxu0 0.0
        %617 = vmatpush1.msra.mxu0 0.0
        %618 = vmatprep.subr.mxu0 0.0
        %619 = vmatpush1.msra.mxu0 0.0
        %620 = vmatprep.subr.mxu0 0.0
        %621 = vmatpush1.msra.mxu0 0.0
        %622 = vmatprep.subr.mxu0 0.0
        %623 = vmatpush1.msra.mxu0 0.0
        %624 = vmatprep.subr.mxu0 0.0
        %625 = vmatpush1.msra.mxu0 0.0
        %626 = vmatprep.subr.mxu0 0.0
        %627 = vmatpush1.msra.mxu0 0.0
        %628 = vmatprep.subr.mxu0 0.0
        %629 = vmatpush1.msra.mxu0 0.0
        %630 = vmatprep.subr.mxu0 0.0
        %631 = vmatpush1.msra.mxu0 0.0
        %632 = vmatprep.subr.mxu0 0.0
        %633 = vmatpush1.msra.mxu0 0.0
        %634 = vmatprep.subr.mxu0 0.0
        %635 = vmatpush1.msra.mxu0 0.0
        %636 = vmatprep.subr.mxu0 0.0
        %637 = vmatpush1.msra.mxu0 0.0
        %638 = vmatprep.subr.mxu0 0.0
        %639 = vmatpush1.msra.mxu0 0.0
        %640 = vmatprep.subr.mxu0 0.0
        %641 = vmatpush1.msra.mxu0 0.0
        %642 = vmatprep.subr.mxu0 0.0
        %643 = vmatpush1.msra.mxu0 0.0
        %644 = vmatprep.subr.mxu0 0.0
        %645 = vmatpush1.msra.mxu0 0.0
        %646 = vmatprep.subr.mxu0 0.0
        %647 = vmatpush1.msra.mxu0 0.0
        %648 = vmatprep.subr.mxu0 0.0
        %649 = vmatpush1.msra.mxu0 0.0
        %650 = vmatprep.subr.mxu0 0.0
        %651 = vmatpush1.msra.mxu0 0.0
        %652 = vmatprep.subr.mxu0 0.0
        %653 = vmatpush1.msra.mxu0 0.0
        %654 = vmatprep.subr.mxu0 0.0
        %655 = vmatpush1.msra.mxu0 0.0
        %656 = vmatprep.subr.mxu0 0.0
        %657 = vmatpush1.msra.mxu0 0.0
        %658 = vmatprep.subr.mxu0 0.0
        %659 = vmatpush1.msra.mxu0 0.0
        %660 = vmatprep.subr.mxu0 0.0
        %661 = vmatpush1.msra.mxu0 0.0
        %662 = vmatprep.subr.mxu0 0.0
        %663 = vmatpush1.msra.mxu0 0.0
        %664 = vmatprep.subr.mxu0 0.0
        %665 = vmatpush1.msra.mxu0 0.0
        %666 = vmatprep.subr.mxu0 0.0
        %667 = vmatpush1.msra.mxu0 0.0
        %668 = vmatprep.subr.mxu0 0.0
        %669 = vmatpush1.msra.mxu0 0.0
        %670 = vmatprep.subr.mxu0 0.0
        %671 = vmatpush1.msra.mxu0 0.0
        %672 = vmatprep.subr.mxu0 0.0
        %673 = vmatpush1.msra.mxu0 0.0
        %674 = vmatprep.subr.mxu0 0.0
        %675 = vmatpush1.msra.mxu0 0.0
        %676 = vmatprep.mubr.f32.mxu0 0.0
        %677 = vmatmul.mubr.f32.gmra.mrb[0].mxu0 %v601
        %v678 = vpop.f32.mrb[0].mxu0
        %v679 = vadd.f32 %v583, %v678
        %v680 = vpop.f32.mrb[0].mxu0
        %681 = vmatprep.mubr.f32.mxu0 0.0
        %682 = vmatmul.mubr.f32.gmra.mrb[0].mxu0 %v604
        %v683 = vpop.f32.mrb[0].mxu0
        %v684 = vadd.f32 %v588, %v683
        %v685 = vpop.f32.mrb[0].mxu0
        %686 = vmatprep.mubr.f32.mxu0 0.0
        %687 = vmatmul.mubr.f32.gmra.mrb[0].mxu0 %v607
        %v688 = vpop.f32.mrb[0].mxu0
        %v689 = vadd.f32 %v593, %v688
        %v690 = vpop.f32.mrb[0].mxu0
        %691 = vmatprep.mubr.f32.mxu0 0.0
        %692 = vmatmul.mubr.f32.gmra.mrb[0].mxu0 %v610
        %v693 = vpop.f32.mrb[0].mxu0
        %v694 = vadd.f32 %v598, %v693
        %v695 = vpop.f32.mrb[0].mxu0
        %696 = vdwg.mxu0
        %697 = vst [vmem:[%s313] sm:$0xff] %v679
        %698 = vst [vmem:[%s313 + $0x8] sm:$0xff] %v684
        %699 = vst [vmem:[%s313 + $0x10] sm:$0xff] %v689
        %700 = vst [vmem:[%s313 + $0x18] sm:$0xff] %v694
        %s701 = sand.u32 %s208, 1
        %s702 = scalar_lea.sflag [#allocation3], %s701
        %s703 = sand.u32 %s208, 1
        %s704 = smul.addr %s703, 32
        %s705 = scalar_lea.vmem [#allocation2], %s704
        // Predicated region
        $region53: #{tpu_custom_call.1} parent=51 // pred_check
          %p706 = pneg %p218
        $region54: #{tpu_custom_call.1} parent=51 // pred_check_branch
          %708 = sbr.rel (%p706) target = $region56
        $region55: #{tpu_custom_call.1} parent=51 // pred_region
          %s710 = ssub.s32 512, 512
          %711 = vsyncadd %s702, %s710
          %s712 = smul.addr %s22, 4
          %s713 = smul.addr %s712, 128
          %s714 = scalar_lea.hbm %s8, %s713
          %s715 = sshll.u32 %s705, 4
          %s716 = int_to_ptr.vmem [resolvable:$true] %s715
          %721 = dma.vmem_to_hbm [thread:$0]  %s716, 512, %s714, %s702, 128, 128, 8
        $region56: #{tpu_custom_call.1} parent=51 // pred_fallthru
          _
      $region52: #{tpu_custom_call.1} parent=5 // pred_fallthru
        _
      %p722 = scmp.le.s32.totalorder 2, %s17
      // Predicated region
      $region57: #{tpu_custom_call.1} parent=5 // pred_check
        %p723 = pneg %p722
      $region58: #{tpu_custom_call.1} parent=5 // pred_check_branch
        %725 = sbr.rel (%p723) target = $region60
      $region59: #{tpu_custom_call.1} parent=5 // pred_region
        %s726 = ssub.s32 %s17, 2
        // Predicated region
        $region61: #{tpu_custom_call.1} parent=59 // pred_check
          %p727 = pneg %p224
        $region62: #{tpu_custom_call.1} parent=59 // pred_check_branch
          %729 = sbr.rel (%p727) target = $region64
        $region63: #{tpu_custom_call.1} parent=59 // pred_region
          %s730 = sand.u32 %s209, 1
          %s731 = scalar_lea.sflag [#allocation3], %s730
          %s732 = sand.u32 %s209, 1
          %s733 = smul.addr %s732, 32
          %s734 = scalar_lea.vmem [#allocation2], %s733
          %735 = dma.done %s731, 512
        $region64: #{tpu_custom_call.1} parent=59 // pred_fallthru
          _
      $region60: #{tpu_custom_call.1} parent=5 // pred_fallthru
        _
    $region6: #{tpu_custom_call.1} parent=1 // loop_footer
      %s21 = sadd.s32 1, %s17
    $region7: #{tpu_custom_call.1} parent=1 // loop_footer_branch
      %16 = sbr.rel target = $region3
    $region8: #{tpu_custom_call.1} parent=1 // loop_exit
      _
    %736 = vsyncpa [#allocation3], 1
    %s737 = scalar_lea.sflag [#allocation3], 1
    %738 = vsyncpa %s737, 1

</llo_original>
